<compile_context>
chip_gen: v7x
topology: tpu7x:2x2x1
jax: 0.10.0
libtpu: 0.0.40
codegen_flags: <defaults>
</compile_context>

<pallas_src>
import math

import jax
import jax.numpy as jnp
from jax.experimental import pallas as pl
from jax.experimental.pallas import tpu as pltpu


def poly_score_kernel(h_ref, r_ref, t_ref, w_ref, s_ref, b_ref, o_ref):
    """One batch-row tile of: score = sum(x*x*w1 + x*w2) + (b1 + b2).

    h/r/t_ref : (TBR, GD) input tiles (f32 or bf16); GD = g*d lane-folded rows
    w_ref     : (6, GD)  f32, rows [w1_h, w1_r, w1_t, w2_h, w2_r, w2_t], each
                lane-tiled g times; VMEM-resident (constant index_map)
    s_ref     : (GD, g)  f32 block-diagonal fold-sum matrix (resident)
    b_ref     : (1, 1)   f32 SMEM scalar holding b1 + b2
    o_ref     : (TBR, g) f32 output tile (lane-dense when d < 128)
    """

    def seg(x_ref, k):
        x = x_ref[...].astype(jnp.float32)          # (TBR, GD), upcast bf16->f32
        w1 = w_ref[k:k + 1, :]                       # (1, GD) broadcast over rows
        w2 = w_ref[k + 3:k + 4, :]                   # (1, GD)
        # Factored: x*(x*w1 + w2) -> 3 VALU ops/elem instead of 4 (no f32 FMA).
        return x * (x * w1 + w2)

    z = seg(h_ref, 0) + seg(r_ref, 1) + seg(t_ref, 2)           # (TBR, GD)  VPU
    # Per-group segment sum as an MXU matmul against block-diagonal ones ->
    # lane-dense (TBR, g) output (for g == 1 this degenerates to a plain sum).
    o_ref[...] = (
        jnp.dot(z, s_ref[...], preferred_element_type=jnp.float32) + b_ref[0, 0]
    )


def _round_up(x, m):
    return ((x + m - 1) // m) * m


def _vmem_config():
    """(vmem_limit_bytes, streamed double-buffer budget) per TPU generation."""
    try:
        cap = int(pltpu.get_tpu_info().vmem_capacity_bytes)
    except Exception:  # non-TPU / interpret fallback: assume the smallest (v7x-like)
        cap = 64 << 20
    if cap >= (96 << 20):          # v5e / v6e: 128 MiB physical VMEM per core
        return 64 << 20, 28 << 20
    # v7x: 64 MiB per TensorCore -> keep pipelining headroom under ~48 MiB scoped
    return 48 << 20, 36 << 20


def _pick_row_tile(num_rows, row_bytes, sub, budget_bytes, max_rows=4096):
    """Rows per block for the folded (rows, GD) layout.

    Budget counts the *padded* double-buffered streamed bytes:
        2 buffers x 3 inputs x TBR x GD x itemsize
    (GD is already a multiple of 128 lanes by construction; TBR is kept a
    multiple of the sublane packing `sub`, so these ARE the padded dims.)
    """
    cap = budget_bytes // (2 * 3 * row_bytes)
    cap = max(sub, (cap // sub) * sub)
    cap = min(cap, max_rows)
    # Aim for >= ~8 grid steps (both v7x TensorCores busy, pipeline depth),
    # but never drop below one (8,128)-aligned tile.
    want = _round_up(max(1, -(-num_rows // 8)), sub)
    return int(max(sub, min(cap, want)))


def polynomial_scoring(h, r, t, w1, b1, w2, b2):
    """h, r, t: (B, d); w1, w2: (3*d,); b1, b2: (1,). Returns (B, 1) float32.

    Equivalent to  linear1(cat([h,r,t],1)**2) + linear2(cat([h,r,t],1)).
    """
    B, d = h.shape
    assert r.shape == (B, d) and t.shape == (B, d)
    D = 3 * d
    assert w1.shape == (D,) and w2.shape == (D,)

    # Lane folding: g batch rows per kernel row so the lane dim (GD = g*d) is a
    # multiple of 128.  The reshape is row-major/contiguous -> free.
    g = 1 if d % 128 == 0 else 128 // math.gcd(d, 128)
    gd = g * d

    itemsize = jnp.dtype(h.dtype).itemsize
    sub = 8 if itemsize >= 4 else (16 if itemsize == 2 else 32)

    vmem_limit, budget = _vmem_config()
    num_rows_hint = -(-B // g)
    tbr = _pick_row_tile(num_rows_hint, gd * itemsize, sub, budget)

    # Pad the batch (zeros) so the folded row count divides the tile exactly;
    # padded rows just produce the bias and are sliced away.  For typical
    # aligned batch sizes this is a no-op (no extra HBM copy).
    Bp = _round_up(B, g * tbr)

    def prep(x):
        if Bp != B:
            x = jnp.pad(x, ((0, Bp - B), (0, 0)))
        return x.reshape(Bp // g, gd)

    hf, rf, tf = prep(h), prep(r), prep(t)
    rows = Bp // g
    grid = (rows // tbr,)

    # Weight rows [w1_h, w1_r, w1_t, w2_h, w2_r, w2_t], lane-tiled g times.
    w_packed = jnp.concatenate(
        [w1.reshape(3, d), w2.reshape(3, d)], axis=0).astype(jnp.float32)
    if g > 1:
        w_packed = jnp.tile(w_packed, (1, g))                        # (6, gd)
    # Block-diagonal ones: column k sums the k-th d-segment of a folded row.
    s_mat = jnp.repeat(jnp.eye(g, dtype=jnp.float32), d, axis=0)     # (gd, g)
    b = (b1 + b2).reshape(1, 1).astype(jnp.float32)                  # SMEM scalar

    out = pl.pallas_call(
        poly_score_kernel,
        out_shape=jax.ShapeDtypeStruct((rows, g), jnp.float32),
        grid=grid,
        in_specs=[
            pl.BlockSpec((tbr, gd), lambda i: (i, 0)),    # h tile (streamed)
            pl.BlockSpec((tbr, gd), lambda i: (i, 0)),    # r tile (streamed)
            pl.BlockSpec((tbr, gd), lambda i: (i, 0)),    # t tile (streamed)
            pl.BlockSpec((6, gd), lambda i: (0, 0)),      # weights (resident)
            pl.BlockSpec((gd, g), lambda i: (0, 0)),      # fold-sum mat (resident)
            pl.BlockSpec((1, 1), lambda i: (0, 0), memory_space=pltpu.SMEM),
        ],
        out_specs=pl.BlockSpec((tbr, g), lambda i: (i, 0)),
        compiler_params=pltpu.CompilerParams(
            dimension_semantics=("parallel",),
            vmem_limit_bytes=vmem_limit,
        ),
    )(hf, rf, tf, w_packed, s_mat, b)

    return out.reshape(Bp, 1)[:B]


def reference(h, r, t, w1, b1, w2, b2):
    x = jnp.concatenate([h, r, t], axis=1).astype(jnp.float32)
    return (x * x) @ w1[:, None] + b1 + x @ w2[:, None] + b2


def _make_inputs(key, B, d, dtype=jnp.float32):
    D = 3 * d
    kh, kr, kt, kw1, kb1, kw2, kb2 = jax.random.split(key, 7)
    h = jax.random.normal(kh, (B, d), dtype=jnp.float32).astype(dtype)
    r = jax.random.normal(kr, (B, d), dtype=jnp.float32).astype(dtype)
    t = jax.random.normal(kt, (B, d), dtype=jnp.float32).astype(dtype)
    bound = 1.0 / float(D) ** 0.5
    w1 = jax.random.uniform(kw1, (D,), jnp.float32, -bound, bound)
    b1 = jax.random.uniform(kb1, (1,), jnp.float32, -bound, bound)
    w2 = jax.random.uniform(kw2, (D,), jnp.float32, -bound, bound)
    b2 = jax.random.uniform(kb2, (1,), jnp.float32, -bound, bound)
    return h, r, t, w1, b1, w2, b2


if __name__ == "__main__":
    key = jax.random.PRNGKey(0)
    k1, k2, k3, k4, k5 = jax.random.split(key, 5)

    # 1) Module-scale case (B=2, d=32): lane-folded g=4, single (8,128) tile.
    args = _make_inputs(k1, 2, 32)
    out = polynomial_scoring(*args)
    jax.block_until_ready(out)
    assert out.shape == (2, 1), out.shape
    assert jnp.allclose(out, reference(*args), atol=1e-2, rtol=1e-2)

    # 2) Multi-step batch grid (8 steps) with lane folding (d=32 -> g=4).
    args = _make_inputs(k2, 256, 32)
    out = polynomial_scoring(*args)
    jax.block_until_ready(out)
    assert out.shape == (256, 1)
    assert jnp.allclose(out, reference(*args), atol=1e-2, rtol=1e-2)

    # 3) d already a lane multiple (g=1 path), multi-step grid.
    args = _make_inputs(k3, 64, 128)
    out = polynomial_scoring(*args)
    jax.block_until_ready(out)
    assert out.shape == (64, 1)
    assert jnp.allclose(out, reference(*args), atol=1e-2, rtol=1e-2)

    # 4) Ragged batch / awkward d (B=50, d=48 -> g=8): padded rows sliced away.
    args = _make_inputs(k4, 50, 48)
    out = polynomial_scoring(*args)
    jax.block_until_ready(out)
    assert out.shape == (50, 1)
    assert jnp.allclose(out, reference(*args), atol=1e-2, rtol=1e-2)

    # 5) bf16-streamed embeddings (halves HBM traffic), f32 math inside.
    args = _make_inputs(k5, 64, 32, dtype=jnp.bfloat16)
    out = polynomial_scoring(*args)
    jax.block_until_ready(out)
    assert out.shape == (64, 1)
    assert jnp.allclose(out, reference(*args), atol=3e-2, rtol=3e-2)

    print("KERNEL_OK")
</pallas_src>

<mosaic_0001>
module attributes {stable_mosaic.version = 11 : i64} {
  func.func @poly_score_kernel(%arg0: i32, %arg1: memref<8x128xf32, #tpu.memory_space<vmem>>, %arg2: memref<8x128xf32, #tpu.memory_space<vmem>>, %arg3: memref<8x128xf32, #tpu.memory_space<vmem>>, %arg4: memref<6x128xf32, #tpu.memory_space<vmem>>, %arg5: memref<128x4xf32, #tpu.memory_space<vmem>>, %arg6: memref<1x1xf32, #tpu.memory_space<smem>>, %arg7: memref<8x4xf32, #tpu.memory_space<vmem>>) attributes {dimension_semantics = [#tpu.dimension_semantics<parallel>], iteration_bounds = array<i64: 1>, scalar_prefetch = 0 : i64, scratch_operands = 0 : i64, tpu.core_type = #tpu.core_type<tc>, window_params = [{transform_indices = @transform_0, window_bounds = array<i64: 8, 128>}, {transform_indices = @transform_1, window_bounds = array<i64: 8, 128>}, {transform_indices = @transform_2, window_bounds = array<i64: 8, 128>}, {pipeline_mode = #tpu.pipeline_mode<synchronous>, transform_indices = @transform_3, window_bounds = array<i64: 6, 128>}, {pipeline_mode = #tpu.pipeline_mode<synchronous>, transform_indices = @transform_4, window_bounds = array<i64: 128, 4>}, {transform_indices = @transform_5, window_bounds = array<i64: 1, 1>}, {transform_indices = @transform_6, window_bounds = array<i64: 8, 4>}]} {
    %c0 = arith.constant 0 : index
    %c0_0 = arith.constant 0 : index
    %0 = vector.load %arg1[%c0, %c0_0] : memref<8x128xf32, #tpu.memory_space<vmem>>, vector<8x128xf32>
    %c0_1 = arith.constant 0 : index
    %c0_2 = arith.constant 0 : index
    %1 = vector.load %arg4[%c0_1, %c0_2] : memref<6x128xf32, #tpu.memory_space<vmem>>, vector<1x128xf32>
    %c3 = arith.constant 3 : index
    %c0_3 = arith.constant 0 : index
    %2 = vector.load %arg4[%c3, %c0_3] : memref<6x128xf32, #tpu.memory_space<vmem>>, vector<1x128xf32>
    %3 = vector.broadcast %1 : vector<1x128xf32> to vector<8x128xf32>
    %4 = arith.mulf %0, %3 : vector<8x128xf32>
    %5 = vector.broadcast %2 : vector<1x128xf32> to vector<8x128xf32>
    %6 = arith.addf %4, %5 : vector<8x128xf32>
    %7 = arith.mulf %0, %6 : vector<8x128xf32>
    %c0_4 = arith.constant 0 : index
    %c0_5 = arith.constant 0 : index
    %8 = vector.load %arg2[%c0_4, %c0_5] : memref<8x128xf32, #tpu.memory_space<vmem>>, vector<8x128xf32>
    %c1 = arith.constant 1 : index
    %c0_6 = arith.constant 0 : index
    %9 = vector.load %arg4[%c1, %c0_6] : memref<6x128xf32, #tpu.memory_space<vmem>>, vector<1x128xf32>
    %c4 = arith.constant 4 : index
    %c0_7 = arith.constant 0 : index
    %10 = vector.load %arg4[%c4, %c0_7] : memref<6x128xf32, #tpu.memory_space<vmem>>, vector<1x128xf32>
    %11 = vector.broadcast %9 : vector<1x128xf32> to vector<8x128xf32>
    %12 = arith.mulf %8, %11 : vector<8x128xf32>
    %13 = vector.broadcast %10 : vector<1x128xf32> to vector<8x128xf32>
    %14 = arith.addf %12, %13 : vector<8x128xf32>
    %15 = arith.mulf %8, %14 : vector<8x128xf32>
    %16 = arith.addf %7, %15 : vector<8x128xf32>
    %c0_8 = arith.constant 0 : index
    %c0_9 = arith.constant 0 : index
    %17 = vector.load %arg3[%c0_8, %c0_9] : memref<8x128xf32, #tpu.memory_space<vmem>>, vector<8x128xf32>
    %c2 = arith.constant 2 : index
    %c0_10 = arith.constant 0 : index
    %18 = vector.load %arg4[%c2, %c0_10] : memref<6x128xf32, #tpu.memory_space<vmem>>, vector<1x128xf32>
    %c5 = arith.constant 5 : index
    %c0_11 = arith.constant 0 : index
    %19 = vector.load %arg4[%c5, %c0_11] : memref<6x128xf32, #tpu.memory_space<vmem>>, vector<1x128xf32>
    %20 = vector.broadcast %18 : vector<1x128xf32> to vector<8x128xf32>
    %21 = arith.mulf %17, %20 : vector<8x128xf32>
    %22 = vector.broadcast %19 : vector<1x128xf32> to vector<8x128xf32>
    %23 = arith.addf %21, %22 : vector<8x128xf32>
    %24 = arith.mulf %17, %23 : vector<8x128xf32>
    %25 = arith.addf %16, %24 : vector<8x128xf32>
    %c0_12 = arith.constant 0 : index
    %c0_13 = arith.constant 0 : index
    %26 = vector.load %arg5[%c0_12, %c0_13] : memref<128x4xf32, #tpu.memory_space<vmem>>, vector<128x4xf32>
    %cst = arith.constant dense<0.000000e+00> : vector<8x4xf32>
    %27 = tpu.matmul %25, %26, %cst {dimension_numbers = #tpu.dot_dimension_numbers<[1], [0], [0], [1], [0, 0, 1, 1], [], []>} : vector<8x128xf32>, vector<128x4xf32>, vector<8x4xf32> -> vector<8x4xf32>
    %c0_14 = arith.constant 0 : index
    %c0_15 = arith.constant 0 : index
    %28 = memref.load %arg6[%c0_14, %c0_15] : memref<1x1xf32, #tpu.memory_space<smem>>
    %29 = vector.broadcast %28 : f32 to vector<8x4xf32>
    %30 = arith.addf %27, %29 : vector<8x4xf32>
    %c0_16 = arith.constant 0 : index
    %c0_17 = arith.constant 0 : index
    %31 = vector.load %arg7[%c0_16, %c0_17] : memref<8x4xf32, #tpu.memory_space<vmem>>, vector<8x4xf32>
    tpu.vector_store %arg7[%c0_16, %c0_17], %30 {strides = array<i32>} : memref<8x4xf32, #tpu.memory_space<vmem>>, vector<8x4xf32>,
    return
  }
  func.func @transform_0(%arg0: i32) -> (i32, i32) {
    %c0_i32 = arith.constant 0 : i32
    %c0_i32_0 = arith.constant 0 : i32
    return %arg0, %c0_i32 : i32, i32
  }
  func.func @transform_1(%arg0: i32) -> (i32, i32) {
    %c0_i32 = arith.constant 0 : i32
    %c0_i32_0 = arith.constant 0 : i32
    return %arg0, %c0_i32 : i32, i32
  }
  func.func @transform_2(%arg0: i32) -> (i32, i32) {
    %c0_i32 = arith.constant 0 : i32
    %c0_i32_0 = arith.constant 0 : i32
    return %arg0, %c0_i32 : i32, i32
  }
  func.func @transform_3(%arg0: i32) -> (i32, i32) {
    %c0_i32 = arith.constant 0 : i32
    %c0_i32_0 = arith.constant 0 : i32
    %c0_i32_1 = arith.constant 0 : i32
    return %c0_i32, %c0_i32_0 : i32, i32
  }
  func.func @transform_4(%arg0: i32) -> (i32, i32) {
    %c0_i32 = arith.constant 0 : i32
    %c0_i32_0 = arith.constant 0 : i32
    %c0_i32_1 = arith.constant 0 : i32
    return %c0_i32, %c0_i32_0 : i32, i32
  }
  func.func @transform_5(%arg0: i32) -> (i32, i32) {
    %c0_i32 = arith.constant 0 : i32
    %c0_i32_0 = arith.constant 0 : i32
    %c0_i32_1 = arith.constant 0 : i32
    return %c0_i32, %c0_i32_0 : i32, i32
  }
  func.func @transform_6(%arg0: i32) -> (i32, i32) {
    %c0_i32 = arith.constant 0 : i32
    %c0_i32_0 = arith.constant 0 : i32
    return %arg0, %c0_i32 : i32, i32
  }
}

</mosaic_0001>

<llo_original>
// kernel: tpu_custom_call.1
$region0: #{tpu_custom_call.1}
  #allocation0 [shape = 'u32[]', space=smem, size = 0x4, offset = 0x4, fixed_abs, tag = 'smem constant byte address 0x4 - core index']
  #allocation1 [shape = 'u32[144,128]{1,0:T(1,128)}', space=vmem, size = 0x12000, scoped, tag = 'internal scratch']
  #allocation2 [shape = 'f32[1,1]{1,0:T(1,128)S(6)}', space=smem, size = 0x200, scoped, tag = 'scoped memory for tpu_custom_call.1']
  %s0 = inlined_call_operand.vmem [shape: f32[8,128], index: 0, kind: input, shape index: {}]
  %s1 = inlined_call_operand.vmem [shape: f32[8,128], index: 1, kind: input, shape index: {}]
  %s2 = inlined_call_operand.vmem [shape: f32[8,128], index: 2, kind: input, shape index: {}]
  %s3 = inlined_call_operand.vmem [shape: f32[6,128], index: 3, kind: input, shape index: {}]
  %s4 = inlined_call_operand.vmem [shape: f32[128,4], index: 4, kind: input, shape index: {}]
  %s5 = inlined_call_operand.<no memory space> [shape: f32[1,1], index: 5, kind: input, shape index: {}]
  %s6 = inlined_call_operand.vmem [shape: f32[8,4], index: 6, kind: output, shape index: {}]
  %s7 = sld [smem:[#allocation0]]
  $region34: #{tpu_custom_call.1} parent=0
    _
  %s9 = ssub.s32 1, %s7
  %s10 = scalar_select 0, %s9, %s7
  %11 = sst [smem:[#allocation2]] %s5
  // Predicated region
  $region2: #{tpu_custom_call.1} parent=0 // pred_check
    _
  $region3: #{tpu_custom_call.1} parent=0 // pred_check_branch
    %13 = sbr.rel (0) target = $region5
  $region4: #{tpu_custom_call.1} parent=0 // pred_region
    _
  $region5: #{tpu_custom_call.1} parent=0 // pred_fallthru
    _
  // Predicated region
  $region6: #{tpu_custom_call.1} parent=0 // pred_check
    _
  $region7: #{tpu_custom_call.1} parent=0 // pred_check_branch
    %15 = sbr.rel (0) target = $region9
  $region8: #{tpu_custom_call.1} parent=0 // pred_region
    _
  $region9: #{tpu_custom_call.1} parent=0 // pred_fallthru
    _
  // Predicated region
  $region10: #{tpu_custom_call.1} parent=0 // pred_check
    _
  $region11: #{tpu_custom_call.1} parent=0 // pred_check_branch
    %17 = sbr.rel (0) target = $region13
  $region12: #{tpu_custom_call.1} parent=0 // pred_region
    _
  $region13: #{tpu_custom_call.1} parent=0 // pred_fallthru
    _
  // Predicated region
  $region14: #{tpu_custom_call.1} parent=0 // pred_check
    _
  $region15: #{tpu_custom_call.1} parent=0 // pred_check_branch
    %19 = sbr.rel (0) target = $region17
  $region16: #{tpu_custom_call.1} parent=0 // pred_region
    _
  $region17: #{tpu_custom_call.1} parent=0 // pred_fallthru
    _
  // Predicated region
  $region18: #{tpu_custom_call.1} parent=0 // pred_check
    _
  $region19: #{tpu_custom_call.1} parent=0 // pred_check_branch
    %21 = sbr.rel (0) target = $region21
  $region20: #{tpu_custom_call.1} parent=0 // pred_region
    _
  $region21: #{tpu_custom_call.1} parent=0 // pred_fallthru
    _
  // Predicated region
  $region22: #{tpu_custom_call.1} parent=0 // pred_check
    _
  $region23: #{tpu_custom_call.1} parent=0 // pred_check_branch
    %23 = sbr.rel (0) target = $region25
  $region24: #{tpu_custom_call.1} parent=0 // pred_region
    _
  $region25: #{tpu_custom_call.1} parent=0 // pred_fallthru
    _
  %v24 = vld [vmem:[%s0] sm:$0xff]
  %v25 = vld [vmem:[%s3] sm:$0x1]
  %v26 = vld [vmem:[%s3 + $0x3] sm:$0x1]
  %v27 = vlaneseq
  %v28 = vshrl.u32 %v27, 7
  %v29 = vsub.s32 0, %v28
  %v30 = vrot.slane %v25, %v29
  %v31 = vmul.f32 %v24, %v30
  %v32 = vlaneseq
  %v33 = vshrl.u32 %v32, 7
  %v34 = vsub.s32 0, %v33
  %v35 = vrot.slane %v26, %v34
  %v36 = vadd.f32 %v31, %v35
  %v37 = vmul.f32 %v24, %v36
  %v38 = vld [vmem:[%s1] sm:$0xff]
  %v39 = vld [vmem:[%s3 + $0x1] sm:$0x1]
  %v40 = vld [vmem:[%s3 + $0x4] sm:$0x1]
  %v41 = vlaneseq
  %v42 = vshrl.u32 %v41, 7
  %v43 = vsub.s32 0, %v42
  %v44 = vrot.slane %v39, %v43
  %v45 = vmul.f32 %v38, %v44
  %v46 = vlaneseq
  %v47 = vshrl.u32 %v46, 7
  %v48 = vsub.s32 0, %v47
  %v49 = vrot.slane %v40, %v48
  %v50 = vadd.f32 %v45, %v49
  %v51 = vmul.f32 %v38, %v50
  %v52 = vadd.f32 %v37, %v51
  %v53 = vld [vmem:[%s2] sm:$0xff]
  %v54 = vld [vmem:[%s3 + $0x2] sm:$0x1]
  %v55 = vld [vmem:[%s3 + $0x5] sm:$0x1]
  %v56 = vlaneseq
  %v57 = vshrl.u32 %v56, 7
  %v58 = vsub.s32 0, %v57
  %v59 = vrot.slane %v54, %v58
  %v60 = vmul.f32 %v53, %v59
  %v61 = vlaneseq
  %v62 = vshrl.u32 %v61, 7
  %v63 = vsub.s32 0, %v62
  %v64 = vrot.slane %v55, %v63
  %v65 = vadd.f32 %v60, %v64
  %v66 = vmul.f32 %v53, %v65
  %v67 = vadd.f32 %v52, %v66
  %v68 = vld [vmem:[%s4] sm:$0xff]
  %v69 = vld [vmem:[%s4 + $0x8] sm:$0xff]
  %v70 = vld [vmem:[%s4 + $0x10] sm:$0xff]
  %v71 = vld [vmem:[%s4 + $0x18] sm:$0xff]
  %v72 = vld [vmem:[%s4 + $0x20] sm:$0xff]
  %v73 = vld [vmem:[%s4 + $0x28] sm:$0xff]
  %v74 = vld [vmem:[%s4 + $0x30] sm:$0xff]
  %v75 = vld [vmem:[%s4 + $0x38] sm:$0xff]
  %v76 = vld [vmem:[%s4 + $0x40] sm:$0xff]
  %v77 = vld [vmem:[%s4 + $0x48] sm:$0xff]
  %v78 = vld [vmem:[%s4 + $0x50] sm:$0xff]
  %v79 = vld [vmem:[%s4 + $0x58] sm:$0xff]
  %v80 = vld [vmem:[%s4 + $0x60] sm:$0xff]
  %v81 = vld [vmem:[%s4 + $0x68] sm:$0xff]
  %v82 = vld [vmem:[%s4 + $0x70] sm:$0xff]
  %v83 = vld [vmem:[%s4 + $0x78] sm:$0xff]
  %s84 = sld [smem:[#allocation2]]
  %v85 = vstv %s84
  %86 = vmatprep.subr.mxu0 0.0
  %87 = vmatpush1.msra.mxu0 %v68
  %88 = vmatprep.subr.mxu0 0.0
  %89 = vmatpush1.msra.mxu0 %v69
  %90 = vmatprep.subr.mxu0 0.0
  %91 = vmatpush1.msra.mxu0 %v70
  %92 = vmatprep.subr.mxu0 0.0
  %93 = vmatpush1.msra.mxu0 %v71
  %94 = vmatprep.subr.mxu0 0.0
  %95 = vmatpush1.msra.mxu0 %v72
  %96 = vmatprep.subr.mxu0 0.0
  %97 = vmatpush1.msra.mxu0 %v73
  %98 = vmatprep.subr.mxu0 0.0
  %99 = vmatpush1.msra.mxu0 %v74
  %100 = vmatprep.subr.mxu0 0.0
  %101 = vmatpush1.msra.mxu0 %v75
  %102 = vmatprep.subr.mxu0 0.0
  %103 = vmatpush1.msra.mxu0 %v76
  %104 = vmatprep.subr.mxu0 0.0
  %105 = vmatpush1.msra.mxu0 %v77
  %106 = vmatprep.subr.mxu0 0.0
  %107 = vmatpush1.msra.mxu0 %v78
  %108 = vmatprep.subr.mxu0 0.0
  %109 = vmatpush1.msra.mxu0 %v79
  %110 = vmatprep.subr.mxu0 0.0
  %111 = vmatpush1.msra.mxu0 %v80
  %112 = vmatprep.subr.mxu0 0.0
  %113 = vmatpush1.msra.mxu0 %v81
  %114 = vmatprep.subr.mxu0 0.0
  %115 = vmatpush1.msra.mxu0 %v82
  %116 = vmatprep.subr.mxu0 0.0
  %117 = vmatpush1.msra.mxu0 %v83
  %118 = vmatprep.subr.mxu0 0.0
  %119 = vmatpush1.msra.mxu0 0.0
  %120 = vmatprep.subr.mxu0 0.0
  %121 = vmatpush1.msra.mxu0 0.0
  %122 = vmatprep.subr.mxu0 0.0
  %123 = vmatpush1.msra.mxu0 0.0
  %124 = vmatprep.subr.mxu0 0.0
  %125 = vmatpush1.msra.mxu0 0.0
  %126 = vmatprep.subr.mxu0 0.0
  %127 = vmatpush1.msra.mxu0 0.0
  %128 = vmatprep.subr.mxu0 0.0
  %129 = vmatpush1.msra.mxu0 0.0
  %130 = vmatprep.subr.mxu0 0.0
  %131 = vmatpush1.msra.mxu0 0.0
  %132 = vmatprep.subr.mxu0 0.0
  %133 = vmatpush1.msra.mxu0 0.0
  %134 = vmatprep.subr.mxu0 0.0
  %135 = vmatpush1.msra.mxu0 0.0
  %136 = vmatprep.subr.mxu0 0.0
  %137 = vmatpush1.msra.mxu0 0.0
  %138 = vmatprep.subr.mxu0 0.0
  %139 = vmatpush1.msra.mxu0 0.0
  %140 = vmatprep.subr.mxu0 0.0
  %141 = vmatpush1.msra.mxu0 0.0
  %142 = vmatprep.subr.mxu0 0.0
  %143 = vmatpush1.msra.mxu0 0.0
  %144 = vmatprep.subr.mxu0 0.0
  %145 = vmatpush1.msra.mxu0 0.0
  %146 = vmatprep.subr.mxu0 0.0
  %147 = vmatpush1.msra.mxu0 0.0
  %148 = vmatprep.subr.mxu0 0.0
  %149 = vmatpush1.msra.mxu0 0.0
  %150 = vmatprep.mubr.f32.mxu0 0.0
  %151 = vmatmul.mubr.f32.gmra.mrb[0].mxu0 %v67
  %v152 = vpop.f32.mrb[0].mxu0
  %v153 = vadd.f32 %v85, %v152
  %v154 = vpop.f32.mrb[0].mxu0
  %155 = vdwg.mxu0
  %vm156 = vcmask 31744
  %157 = vst.msk [vmem:[%s6] sm:$0xff] %vm156, %v153
  // Predicated region
  $region26: #{tpu_custom_call.1} parent=0 // pred_check
    _
  $region27: #{tpu_custom_call.1} parent=0 // pred_check_branch
    %159 = sbr.rel (0) target = $region29
  $region28: #{tpu_custom_call.1} parent=0 // pred_region
    _
  $region29: #{tpu_custom_call.1} parent=0 // pred_fallthru
    _
  // Predicated region
  $region30: #{tpu_custom_call.1} parent=0 // pred_check
    _
  $region31: #{tpu_custom_call.1} parent=0 // pred_check_branch
    %161 = sbr.rel (0) target = $region33
  $region32: #{tpu_custom_call.1} parent=0 // pred_region
    _
  $region33: #{tpu_custom_call.1} parent=0 // pred_fallthru
    _

</llo_original>
